<compile_context>
chip_gen: v5e
topology: v5e:2x2
jax: 0.10.0
libtpu: 0.0.40
codegen_flags: <defaults>
</compile_context>

<pallas_src>
import functools

import jax
import jax.numpy as jnp
from jax.experimental import pallas as pl
from jax.experimental.pallas import tpu as pltpu


def _vmem_capacity_bytes():
    try:
        return int(pltpu.get_tpu_info().vmem_capacity_bytes)
    except Exception:
        return 64 * 1024 * 1024          # conservative default (v7x per-TC VMEM)


def _round_up(x, m):
    return -(-x // m) * m


# ---------------------------------------------------------------------------
# Full-gram kernel: FG += (feat * mask)[:, cols<hw] @ (...)^T, reduction over hw.
# Grid = (num_splits "parallel", k_inner "arbitrary"); f32 accumulation directly
# into the resident output block (one partial gram per split).
# ---------------------------------------------------------------------------
def _full_gram_kernel(*refs, k_inner, tk, hw, has_mask, ragged, compute_dtype):
    if has_mask:
        feat_ref, mask_ref, out_ref = refs
    else:
        feat_ref, out_ref = refs
        mask_ref = None

    @pl.when(pl.program_id(1) == 0)
    def _():
        out_ref[...] = jnp.zeros_like(out_ref)

    f = feat_ref[0]                              # (ch, tk), streamed in input dtype (f32)
    if has_mask:
        f = f * mask_ref[...]                    # mask multiply in f32 (before narrowing)
    if ragged:
        # Zero logical columns >= hw (tail of the last K tile; also covers clamped blocks).
        col0 = (pl.program_id(0) * k_inner + pl.program_id(1)) * tk
        cols = col0 + jax.lax.broadcasted_iota(jnp.int32, f.shape, 1)
        f = jnp.where(cols < hw, f, 0.0)
    f = f.astype(compute_dtype)                  # in-kernel narrow cast (no extra HBM pass)
    # NOTE(perf): on MXU-bound large-ch layers, verify via pl.lower_as_mlir that this
    # ((1,),(1,)) self-contraction does not emit a per-tile XLU transpose of the RHS.
    out_ref[...] += jax.lax.dot_general(
        f, f, (((1,), (1,)), ((), ())),
        preferred_element_type=jnp.float32)[None, :, :]


def full_gram_pallas(y, mask=None, *, compute_dtype=jnp.bfloat16):
    """Full (ch, ch) gram of batch element 0 of y (optionally of y * mask),
    divided by b * local_ch * h * w (matching the PyTorch reference scale)."""
    b, ch, h, w = y.shape
    local_ch = max(ch // 2, 1)
    hw = h * w
    itemsize = jnp.dtype(y.dtype).itemsize

    feat3 = y.reshape(b, ch, hw)                 # free reshape; kernel reads y[0] directly

    has_mask = mask is not None
    if has_mask:
        if mask.size == hw:                      # purely spatial mask -> single (1, hw) row
            m2d = mask.reshape(1, hw).astype(jnp.float32)
        else:                                    # per-channel (or oddly batched) mask
            m2d = jnp.broadcast_to(mask, y.shape)[0].reshape(ch, hw).astype(jnp.float32)
        mrows = m2d.shape[0]
    else:
        m2d = None
        mrows = 0

    # ---- device-derived VMEM budget (v5e/v6e: 128 MiB physical; v7x: 64 MiB) ----
    vmem_cap = _vmem_capacity_bytes()
    reserve = 2 * ch * ch * 4 + (4 << 20)        # resident f32 output block(s) + slack
    input_budget = max(4 << 20, min(vmem_cap // 2, 64 << 20) - reserve)
    vmem_limit = max(32 << 20,
                     min(vmem_cap - (8 << 20), input_budget + reserve + (16 << 20)))

    bytes_per_col = 2 * (ch * itemsize + mrows * 4)          # x2: double-buffered inputs
    max_tk = max(128, (input_budget // bytes_per_col) // 128 * 128)

    # ---- hw tiling: no HBM-side padding; ragged tail handled in-kernel ----
    k_total = max(1, -(-hw // max_tk))
    num_splits = 2 if k_total >= 4 else 1        # split reduction across 2 TCs (v7x); serial elsewhere
    if num_splits > 1:
        k_total = _round_up(k_total, num_splits)
    k_inner = k_total // num_splits
    if k_total == 1:
        tk = hw                                  # single full-extent block
    else:
        tk = _round_up(-(-hw // k_total), 128)   # rebalanced: tail padding < 128 cols/tile
    ragged = (k_total * tk) != hw
    last_blk = max(0, -(-hw // tk) - 1)          # clamp fully-OOB blocks (then masked to 0)

    kernel = functools.partial(
        _full_gram_kernel, k_inner=k_inner, tk=tk, hw=hw,
        has_mask=has_mask, ragged=ragged, compute_dtype=compute_dtype)

    def col_idx(p, k):
        return jnp.minimum(p * k_inner + k, last_blk)

    in_specs = [pl.BlockSpec((1, ch, tk), lambda p, k: (0, 0, col_idx(p, k)))]
    operands = [feat3]
    if has_mask:
        in_specs.append(pl.BlockSpec((mrows, tk), lambda p, k: (0, col_idx(p, k))))
        operands.append(m2d)

    partials = pl.pallas_call(
        kernel,
        out_shape=jax.ShapeDtypeStruct((num_splits, ch, ch), jnp.float32),
        grid=(num_splits, k_inner),
        in_specs=in_specs,
        out_specs=pl.BlockSpec((1, ch, ch), lambda p, k: (p, 0, 0)),
        compiler_params=pltpu.CompilerParams(
            dimension_semantics=("parallel", "arbitrary"),
            vmem_limit_bytes=int(vmem_limit)),
    )(*operands)

    scale = 1.0 / float(b * local_ch * h * w)
    return jnp.sum(partials, axis=0) * scale                  # (ch, ch) f32


def circular_band(full_gram, local_ch):
    """gram[i, a, b] = FG[(i+a) % ch, (i+b) % ch] via contiguous dynamic slices."""
    ch = full_gram.shape[0]
    ext = jnp.concatenate([full_gram, full_gram[:local_ch]], axis=0)
    ext = jnp.concatenate([ext, ext[:, :local_ch]], axis=1)    # (ch+lch, ch+lch)

    def window(i):
        return jax.lax.dynamic_slice(ext, (i, i), (local_ch, local_ch))

    return jax.vmap(window)(jnp.arange(ch, dtype=jnp.int32))   # (ch, lch, lch)


def gram_matrix_pallas(y, mask=None, *, compute_dtype=jnp.bfloat16):
    return circular_band(full_gram_pallas(y, mask, compute_dtype=compute_dtype),
                         max(y.shape[1] // 2, 1))


# ---------------------------------------------------------------------------
# FG-domain MSE: loss = weight/(ch*lch*lch) * sum(count[p,q] * (FG - TFG)^2)
# where count[p,q] is the static multiplicity of FG[p,q] in the banded gram.
# ---------------------------------------------------------------------------
def _band_multiplicity(ch, local_ch):
    i = jnp.arange(ch)
    valid = (((jnp.arange(ch)[None, :] - i[:, None]) % ch) < local_ch).astype(jnp.float32)
    return valid.T @ valid                                     # (ch, ch) counts


def _fg_mse_kernel(fg_ref, tfg_ref, cnt_ref, out_ref, *, scale):
    d = fg_ref[...] - tfg_ref[...]
    s = jnp.sum(d * d * cnt_ref[...], axis=1, keepdims=True)   # (ch, 1)
    out_ref[...] = jnp.sum(s, axis=0, keepdims=True) * scale   # (1, 1)


def fg_mse_loss_pallas(fg, target_fg, count, weight, local_ch):
    ch = fg.shape[0]
    scale = float(weight) / float(ch * local_ch * local_ch)
    if 3 * ch * ch * 4 > (24 << 20):
        # TODO(synk): tile the FG-domain MSE for absurdly large channel counts.
        d = (fg - target_fg).astype(jnp.float32)
        return jnp.sum(d * d * count) * scale
    out = pl.pallas_call(
        functools.partial(_fg_mse_kernel, scale=scale),
        out_shape=jax.ShapeDtypeStruct((1, 1), jnp.float32),
        grid=(1,),
        in_specs=[pl.BlockSpec((ch, ch), lambda i: (0, 0))] * 3,
        out_specs=pl.BlockSpec((1, 1), lambda i: (0, 0)),
        compiler_params=pltpu.CompilerParams(
            dimension_semantics=("arbitrary",),
            vmem_limit_bytes=32 * 1024 * 1024),
    )(fg.astype(jnp.float32), target_fg.astype(jnp.float32), count)
    return out[0, 0]


# ---------------------------------------------------------------------------
# StyleLoss module port
# ---------------------------------------------------------------------------
class StyleLossPallas:
    """JAX/Pallas port of StyleLoss.  forward(x) returns x unchanged; the style
    loss is stored on self.loss and the windowed gram on self.G."""

    def __init__(self, target_feature, weight, mode=None, input_mask=None,
                 target_mask=None):
        self.weight = float(weight)
        self.mode = mode
        self.loss = jnp.float32(0.0)
        self.input_mask = input_mask
        self.target_mask = target_mask
        self.target = None
        self._target_fg = None
        if self.mode == 'capture':
            ch = target_feature.shape[1]
            self._target_fg = full_gram_pallas(target_feature, self.target_mask)
            self.target = circular_band(self._target_fg, max(ch // 2, 1))
            # (the reference's `self.target.div(...)` result is discarded — no-op)

    def __call__(self, x):
        if self.mode == 'loss':
            ch = x.shape[1]
            local_ch = max(ch // 2, 1)
            fg = full_gram_pallas(x, self.input_mask)
            self.G = circular_band(fg, local_ch)
            # (the reference's `self.G.div(...)` result is discarded — no-op)
            if self._target_fg is not None:
                count = _band_multiplicity(ch, local_ch)
                self.loss = fg_mse_loss_pallas(fg, self._target_fg, count,
                                               self.weight, local_ch)
            else:
                # TODO(synk): externally-injected banded targets use a plain-JAX MSE.
                self.loss = jnp.float32(self.weight) * jnp.mean(
                    (self.G - self.target) ** 2)
        return x


if __name__ == "__main__":
    key = jax.random.PRNGKey(0)
    k1, k2, k3 = jax.random.split(key, 3)

    B, C, H, W = 2, 16, 16, 16
    target_feature = jax.random.normal(k1, (B, C, H, W), jnp.float32)
    x = jax.random.normal(k2, (B, C, H, W), jnp.float32)
    input_mask = (jax.random.uniform(k3, (1, 1, H, W)) > 0.5).astype(jnp.float32)
    weight = 5.0

    # Capture phase: build the target gram with the Pallas kernels.
    module = StyleLossPallas(target_feature, weight, mode='capture')
    # Switch to loss phase (as the texture-transfer optimization loop does).
    module.mode = 'loss'
    module.input_mask = input_mask

    out = module(x)
    jax.block_until_ready((out, module.loss, module.G))

    # Lightweight pure-JAX f32 reference check.
    def gram_ref(y, mask=None):
        b, ch, h, w = y.shape
        lch = ch // 2
        yy = y if mask is None else y * jnp.broadcast_to(mask, y.shape)
        feat = yy[0].reshape(ch, h * w)
        idx = (jnp.arange(ch)[:, None] + jnp.arange(lch)[None, :]) % ch
        f = feat[idx]
        return jnp.einsum('cih,cjh->cij', f, f) / (b * lch * h * w)

    t_ref = gram_ref(target_feature)
    g_ref_ = gram_ref(x, input_mask)
    loss_ref = jnp.mean((g_ref_ - t_ref) ** 2) * weight

    assert out.shape == x.shape
    assert module.G.shape == (C, C // 2, C // 2)
    # bf16 matmul inputs (f32 accumulation) => small drift vs. the f32 reference.
    assert jnp.allclose(module.G, g_ref_, rtol=2e-2, atol=5e-4), \
        float(jnp.max(jnp.abs(module.G - g_ref_)))
    assert jnp.allclose(module.loss, loss_ref, rtol=5e-2, atol=1e-5), \
        (float(module.loss), float(loss_ref))

    print("KERNEL_OK")
</pallas_src>

<mosaic_0001>
module attributes {stable_mosaic.version = 11 : i64} {
  func.func @_full_gram_kernel(%arg0: i32, %arg1: i32, %arg2: memref<1x16x256xf32, #tpu.memory_space<vmem>>, %arg3: memref<1x16x16xf32, #tpu.memory_space<vmem>>) attributes {dimension_semantics = [#tpu.dimension_semantics<parallel>, #tpu.dimension_semantics<arbitrary>], iteration_bounds = array<i64: 1, 1>, scalar_prefetch = 0 : i64, scratch_operands = 0 : i64, tpu.core_type = #tpu.core_type<tc>, window_params = [{transform_indices = @transform_0, window_bounds = array<i64: 1, 16, 256>}, {transform_indices = @transform_1, window_bounds = array<i64: 1, 16, 16>}]} {
    %c0_i32 = arith.constant 0 : i32
    %0 = arith.cmpi eq, %arg1, %c0_i32 : i32
    %1 = arith.extui %0 : i1 to i32
    %c0_i32_0 = arith.constant 0 : i32
    %2 = arith.cmpi ne, %1, %c0_i32_0 : i32
    scf.if %2 {
      %cst_9 = arith.constant 0.000000e+00 : f32
      %11 = vector.broadcast %cst_9 : f32 to vector<1x16x16xf32>
      %c0_10 = arith.constant 0 : index
      %c0_11 = arith.constant 0 : index
      %c0_12 = arith.constant 0 : index
      %12 = vector.load %arg3[%c0_10, %c0_11, %c0_12] : memref<1x16x16xf32, #tpu.memory_space<vmem>>, vector<1x16x16xf32>
      tpu.vector_store %arg3[%c0_10, %c0_11, %c0_12], %11 {strides = array<i32>} : memref<1x16x16xf32, #tpu.memory_space<vmem>>, vector<1x16x16xf32>,
    } else {
    }
    %c0 = arith.constant 0 : index
    %c0_1 = arith.constant 0 : index
    %c0_2 = arith.constant 0 : index
    %3 = vector.load %arg2[%c0, %c0_1, %c0_2] : memref<1x16x256xf32, #tpu.memory_space<vmem>>, vector<1x16x256xf32>
    %4 = vector.shape_cast %3 : vector<1x16x256xf32> to vector<16x256xf32>
    %5 = arith.truncf %4 : vector<16x256xf32> to vector<16x256xbf16>
    %c0_3 = arith.constant 0 : index
    %c0_4 = arith.constant 0 : index
    %c0_5 = arith.constant 0 : index
    %6 = vector.load %arg3[%c0_3, %c0_4, %c0_5] : memref<1x16x16xf32, #tpu.memory_space<vmem>>, vector<1x16x16xf32>
    %cst = arith.constant dense<0.000000e+00> : vector<16x16xf32>
    %7 = tpu.matmul %5, %5, %cst {dimension_numbers = #tpu.dot_dimension_numbers<[1], [1], [0], [0], [0, 0, 1, 0], [], []>} : vector<16x256xbf16>, vector<16x256xbf16>, vector<16x16xf32> -> vector<16x16xf32>
    %8 = vector.shape_cast %7 : vector<16x16xf32> to vector<1x16x16xf32>
    %9 = arith.addf %6, %8 : vector<1x16x16xf32>
    %c0_6 = arith.constant 0 : index
    %c0_7 = arith.constant 0 : index
    %c0_8 = arith.constant 0 : index
    %10 = vector.load %arg3[%c0_6, %c0_7, %c0_8] : memref<1x16x16xf32, #tpu.memory_space<vmem>>, vector<1x16x16xf32>
    tpu.vector_store %arg3[%c0_6, %c0_7, %c0_8], %9 {strides = array<i32>} : memref<1x16x16xf32, #tpu.memory_space<vmem>>, vector<1x16x16xf32>,
    return
  }
  func.func @transform_0(%arg0: i32, %arg1: i32) -> (i32, i32, i32) {
    %c1_i32 = arith.constant 1 : i32
    %0 = arith.muli %arg0, %c1_i32 : i32
    %1 = arith.addi %0, %arg1 : i32
    %c0_i32 = arith.constant 0 : i32
    %2 = arith.minsi %1, %c0_i32 : i32
    %c0_i32_0 = arith.constant 0 : i32
    %c0_i32_1 = arith.constant 0 : i32
    %c0_i32_2 = arith.constant 0 : i32
    return %c0_i32_0, %c0_i32_1, %2 : i32, i32, i32
  }
  func.func @transform_1(%arg0: i32, %arg1: i32) -> (i32, i32, i32) {
    %c0_i32 = arith.constant 0 : i32
    %c0_i32_0 = arith.constant 0 : i32
    %c0_i32_1 = arith.constant 0 : i32
    return %arg0, %c0_i32, %c0_i32_0 : i32, i32, i32
  }
}

</mosaic_0001>

<llo_original>
// kernel: tpu_custom_call.1
$region0: #{tpu_custom_call.1}
  #allocation0 [shape = 'u32[]', space=smem, size = 0x4, offset = 0x4, fixed_abs, tag = 'smem constant byte address 0x4 - core index']
  #allocation1 [shape = 'u32[72,128]{1,0:T(1,128)}', space=vmem, size = 0x9000, scoped, tag = 'internal scratch']
  %s0 = inlined_call_operand.hbm [shape: f32[2,16,256], index: 0, kind: input, shape index: {}]
  %s1 = inlined_call_operand.hbm [shape: f32[1,16,16], index: 1, kind: output, shape index: {}]
  %s2 = sld [smem:[#allocation0]]
  $region22: #{tpu_custom_call.1} parent=0
    _
  %s4 = ssub.s32 1, %s2
  %s5 = scalar_select 0, %s4, %s2
  $region1: #{tpu_custom_call.1} parent=0
    #allocation2 [shape = 'u8[16384]{0}', space=vmem, size = 0x4000, scoped, tag = 'input window, operand 0, single buffered']
    #allocation3 [shape = 's32[1]{0}', space=sflag, size = 0x4, scoped, tag = 'scoped memory for tpu_custom_call.1']
    #allocation4 [shape = 's32[1]{0}', space=sflag, size = 0x4, scoped, tag = 'scoped memory for tpu_custom_call.1']
    #allocation5 [shape = 'u8[8192]{0}', space=vmem, size = 0x2000, scoped, tag = 'output window, operand 0, single buffered']
    %6 = vsyncpa [#allocation3], 0
    %7 = vsyncpa [#allocation4], 0
    // Predicated region
    $region2: #{tpu_custom_call.1} parent=1 // pred_check
      _
    $region3: #{tpu_custom_call.1} parent=1 // pred_check_branch
      %9 = sbr.rel (0) target = $region5
    $region4: #{tpu_custom_call.1} parent=1 // pred_region
      %s10 = sadd.s32 0, 0
      %p11 = scmp.lt.s32.totalorder %s10, 0
      %s12 = scalar_select %p11, %s10, 0
      %s13 = smul.u32 2, %s12
      %15 = vsyncadd [#allocation3], 0
      %s16 = smul.addr %s13, 8
      %s17 = scalar_lea.hbm %s0, %s16
      %s18 = sshll.u32 %s17, 4
      %s19 = int_to_ptr.hbm [resolvable:$true] %s18
      %s20 = sshll.u32 [#allocation2], 4
      %s21 = int_to_ptr.vmem [resolvable:$true] %s20
      %26 = dma.hbm_to_vmem [thread:$0]  %s19, 512, %s21, [#allocation3], 256, 256, 16
    $region5: #{tpu_custom_call.1} parent=1 // pred_fallthru
      _
    // Predicated region
    $region6: #{tpu_custom_call.1} parent=1 // pred_check
      _
    $region7: #{tpu_custom_call.1} parent=1 // pred_check_branch
      %28 = sbr.rel (0) target = $region9
    $region8: #{tpu_custom_call.1} parent=1 // pred_region
      %30 = dma.done [#allocation3], 512
    $region9: #{tpu_custom_call.1} parent=1 // pred_fallthru
      _
    %s31 = sadd.s32 0, 0
    %p32 = scmp.lt.s32.totalorder %s31, 0
    %s33 = scalar_select %p32, %s31, 0
    %s34 = smul.u32 2, %s33
    %p36 = scmp.eq.s32.totalorder 0, 0
    // Predicated region
    $region10: #{tpu_custom_call.1} parent=1 // pred_check
      %p37 = pneg %p36
    $region11: #{tpu_custom_call.1} parent=1 // pred_check_branch
      %39 = sbr.rel (%p37) target = $region13
    $region12: #{tpu_custom_call.1} parent=1 // pred_region
      %vm40 = vcmask 130048
      %41 = vst.msk [vmem:[#allocation5] sm:$0xff] %vm40, 0.0
      %42 = vst.msk [vmem:[#allocation5 + $0x8] sm:$0xff] %vm40, 0.0
    $region13: #{tpu_custom_call.1} parent=1 // pred_fallthru
      _
    %v43 = vld [vmem:[#allocation2] sm:$0xff]
    %v44 = vld [vmem:[#allocation2 + $0x8] sm:$0xff]
    %v45 = vld [vmem:[#allocation2 + $0x10] sm:$0xff]
    %v46 = vld [vmem:[#allocation2 + $0x18] sm:$0xff]
    %v47 = vpack.c.bf16 %v45, %v43
    %v48 = vpack.c.bf16 %v46, %v44
    %v49 = vld [vmem:[#allocation5] sm:$0xff]
    %v50 = vld [vmem:[#allocation5 + $0x8] sm:$0xff]
    %51 = vmatpush.bf16.xpose.msra.mxu0 0
    %52 = vmatpush.bf16.xpose.msra.mxu0 0
    %53 = vmatpush.bf16.xpose.msra.mxu0 0
    %54 = vmatpush.bf16.xpose.msra.mxu0 0
    %55 = vmatpush.bf16.xpose.msra.mxu0 0
    %56 = vmatpush.bf16.xpose.msra.mxu0 0
    %57 = vmatpush.bf16.xpose.msra.mxu0 0
    %58 = vmatpush.bf16.xpose.msra.mxu0 %v47
    %59 = vmatmul.bf16.gmra.mxu0 %v47
    %v60 = vpop.f32.mrf.mxu0
    %v61 = vadd.f32 0.0, %v60
    %v62 = vpop.f32.mrf.mxu0
    %v63 = vadd.f32 0.0, %v62
    %64 = vdwg.mxu0
    %65 = vmatpush.bf16.xpose.msra.mxu0 0
    %66 = vmatpush.bf16.xpose.msra.mxu0 0
    %67 = vmatpush.bf16.xpose.msra.mxu0 0
    %68 = vmatpush.bf16.xpose.msra.mxu0 0
    %69 = vmatpush.bf16.xpose.msra.mxu0 0
    %70 = vmatpush.bf16.xpose.msra.mxu0 0
    %71 = vmatpush.bf16.xpose.msra.mxu0 0
    %72 = vmatpush.bf16.xpose.msra.mxu0 %v48
    %73 = vmatmul.bf16.gmra.mxu0 %v48
    %v74 = vpop.f32.mrf.mxu0
    %v75 = vadd.f32 %v61, %v74
    %v76 = vpop.f32.mrf.mxu0
    %v77 = vadd.f32 %v63, %v76
    %78 = vdwg.mxu0
    %v79 = vadd.f32 %v49, %v75
    %v80 = vadd.f32 %v50, %v77
    %vm81 = vcmask 130048
    %82 = vst.msk [vmem:[#allocation5] sm:$0xff] %vm81, %v79
    %83 = vst.msk [vmem:[#allocation5 + $0x8] sm:$0xff] %vm81, %v80
    // Predicated region
    $region14: #{tpu_custom_call.1} parent=1 // pred_check
      _
    $region15: #{tpu_custom_call.1} parent=1 // pred_check_branch
      %85 = sbr.rel (0) target = $region17
    $region16: #{tpu_custom_call.1} parent=1 // pred_region
      %87 = vsyncadd [#allocation4], 0
      %s88 = sshll.u32 [#allocation5], 4
      %s89 = int_to_ptr.vmem [resolvable:$true] %s88
      %s90 = sshll.u32 %s1, 4
      %s91 = int_to_ptr.hbm [resolvable:$true] %s90
      %96 = dma.vmem_to_hbm [thread:$0]  %s89, 256, %s91, [#allocation4], 128, 128, 8
    $region17: #{tpu_custom_call.1} parent=1 // pred_fallthru
      _
    // Predicated region
    $region18: #{tpu_custom_call.1} parent=1 // pred_check
      _
    $region19: #{tpu_custom_call.1} parent=1 // pred_check_branch
      %98 = sbr.rel (0) target = $region21
    $region20: #{tpu_custom_call.1} parent=1 // pred_region
      %100 = dma.done [#allocation4], 256
    $region21: #{tpu_custom_call.1} parent=1 // pred_fallthru
      _
    %101 = vsyncpa [#allocation3], 1
    %102 = vsyncpa [#allocation4], 1

</llo_original>
